<compile_context>
chip_gen: v6e
topology: v6e:2x2x1
jax: 0.10.0
libtpu: 0.0.40
codegen_flags: <defaults>
</compile_context>

<pallas_src>
import functools

import jax
import jax.numpy as jnp
from jax import lax
from jax.experimental import pallas as pl
from jax.experimental.pallas import tpu as pltpu


_FUSED_CHUNK = 512       # lanes per in-kernel chunk on the single-pass path
_STATS_TILE_CAP = 2048   # lane cap for pass-1 tiles (input-only footprint)
_NORM_TILE_CAP = 1024    # lane cap for pass-2 tiles (in+out footprint)


# ------------------------------- kernels ------------------------------------


def _gln_fused_kernel(y_ref, gamma_ref, beta_ref, o_ref, *, inv_cnt, eps,
                      chunk, narrow):
    """Single-pass gLN: whole (1, N, K) slab resident; chunked stats+apply."""
    k_len = y_ref.shape[-1]

    def partial_sums(blk):
        blk = blk.astype(jnp.float32)
        return jnp.sum(blk), jnp.sum(blk * blk)

    # --- statistics: chunked so no full-slab f32 temporaries materialize ---
    if k_len <= chunk:
        s1, s2 = partial_sums(y_ref[...])
    else:
        n_full = k_len // chunk
        rem = k_len - n_full * chunk

        def body(i, carry):
            acc1, acc2 = carry
            start = pl.multiple_of(i * chunk, chunk)
            c1, c2 = partial_sums(y_ref[:, :, pl.ds(start, chunk)])
            return acc1 + c1, acc2 + c2

        s1, s2 = lax.fori_loop(0, n_full, body,
                               (jnp.float32(0.0), jnp.float32(0.0)))
        if rem:
            c1, c2 = partial_sums(y_ref[:, :, pl.ds(n_full * chunk, rem)])
            s1, s2 = s1 + c1, s2 + c2

    mean = s1 * inv_cnt
    var = jnp.maximum(s2 * inv_cnt - mean * mean, 0.0)   # cancellation guard
    inv_std = lax.rsqrt(var + eps)                       # EUP slot, cheap

    # Per-channel affine precomputed once: out = y * a + b (2 ops/element).
    a = gamma_ref[...].astype(jnp.float32) * inv_std     # (N, 1)
    b = beta_ref[...].astype(jnp.float32) - mean * a     # (N, 1)
    if narrow:                                           # bf16 VALU chips only
        a_row = a[None].astype(jnp.bfloat16)
        b_row = b[None].astype(jnp.bfloat16)
    else:
        a_row = a[None]
        b_row = b[None]

    # --- apply: chunked as well, so working set stays at chunk size ---------
    def apply(start, length):
        blk = y_ref[:, :, pl.ds(start, length)]
        if narrow:
            out = blk * a_row + b_row
        else:
            out = blk.astype(jnp.float32) * a_row + b_row
        o_ref[:, :, pl.ds(start, length)] = out.astype(o_ref.dtype)

    if k_len <= chunk:
        apply(0, k_len)
    else:
        n_full = k_len // chunk
        rem = k_len - n_full * chunk

        def body2(i, carry):
            apply(pl.multiple_of(i * chunk, chunk), chunk)
            return carry

        lax.fori_loop(0, n_full, body2, 0)
        if rem:
            apply(n_full * chunk, rem)


def _gln_stats_kernel(y_ref, s1_ref, s2_ref, *, k_len, k_tile, nk_inner,
                      nk_total):
    """Pass 1: accumulate per-(split, batch) sum / sum-of-squares over K."""
    s = pl.program_id(0)        # K-split index (size 1 unless M == 1)
    k = pl.program_id(2)        # inner K-tile index ("arbitrary" axis)

    @pl.when(k == 0)
    def _():
        s1_ref[...] = jnp.zeros_like(s1_ref)
        s2_ref[...] = jnp.zeros_like(s2_ref)

    def accumulate(yf):
        s1_ref[...] += jnp.sum(yf)
        s2_ref[...] += jnp.sum(yf * yf)

    if k_len % k_tile == 0:
        # Tiles divide K: no masking work at all on any tile.
        accumulate(y_ref[...].astype(jnp.float32))
    else:
        g = s * nk_inner + k                       # global K-tile index
        is_last = g == (nk_total - 1)

        @pl.when(jnp.logical_not(is_last))
        def _():                                   # full tiles: mask-free
            accumulate(y_ref[...].astype(jnp.float32))

        @pl.when(is_last)
        def _():                                   # only the padded tail tile
            yf = y_ref[...].astype(jnp.float32)
            lane = lax.broadcasted_iota(jnp.int32, yf.shape, 2) + g * k_tile
            accumulate(jnp.where(lane < k_len, yf, 0.0))


def _gln_norm_kernel(y_ref, a_ref, b_ref, o_ref, *, narrow):
    """Pass 2: pure 2-op/element sweep, out = y * a + b (a/b precomputed)."""
    y = y_ref[...]                                 # (1, N, k_tile)
    a = a_ref[...]                                 # (1, N, 1) float32
    b = b_ref[...]
    if narrow:
        out = y * a.astype(jnp.bfloat16) + b.astype(jnp.bfloat16)
    else:
        out = y.astype(jnp.float32) * a + b
    o_ref[...] = out.astype(o_ref.dtype)


# ------------------------------- wrappers ------------------------------------


def _usable_vmem_bytes():
    """Conservative VMEM budget: ~64 MiB on 128-MiB chips, ~40 MiB on v7x."""
    try:
        cap = int(pltpu.get_tpu_info().vmem_capacity_bytes)
    except Exception:
        cap = 64 * 1024 * 1024          # conservative default (v7x per-TC)
    return min(64 * 1024 * 1024, (cap * 5) // 8)


def _bf16_valu():
    """v5e has no bf16 VALU: keep arithmetic in f32 there; narrow on v6e/v7x."""
    try:
        kind = jax.devices()[0].device_kind.lower()
    except Exception:
        return False
    return ("v6" in kind) or ("v7" in kind)


def _pick_k_tile(k_len, budget_lanes, cap_lanes):
    """Largest 128-multiple tile <= min(budget, cap, K); prefer a divisor of K."""
    limit = max(128, min(int(budget_lanes), cap_lanes))
    if k_len <= limit:
        return k_len                     # whole K axis as one (full-dim) tile
    best = (limit // 128) * 128
    t = best
    while t >= 128:
        if k_len % t == 0:
            return t                     # dividing tile: no tail, no masking
        t -= 128
    return best


def _gln_single_pass(y, gamma2d, beta2d, eps, vmem_limit, narrow):
    M, N, K = y.shape
    inv_cnt = 1.0 / float(N * K)
    bytes_io = y.dtype.itemsize
    cost = pl.CostEstimate(
        flops=6 * M * N * K,
        transcendentals=M,
        bytes_accessed=2 * M * N * K * bytes_io + 2 * N * 4,
    )
    return pl.pallas_call(
        functools.partial(_gln_fused_kernel, inv_cnt=inv_cnt, eps=eps,
                          chunk=_FUSED_CHUNK, narrow=narrow),
        out_shape=jax.ShapeDtypeStruct((M, N, K), y.dtype),
        grid_spec=pltpu.PrefetchScalarGridSpec(
            num_scalar_prefetch=0,
            grid=(M,),
            in_specs=[
                pl.BlockSpec((1, N, K), lambda m: (m, 0, 0)),
                pl.BlockSpec((N, 1), lambda m: (0, 0)),
                pl.BlockSpec((N, 1), lambda m: (0, 0)),
            ],
            out_specs=pl.BlockSpec((1, N, K), lambda m: (m, 0, 0)),
        ),
        compiler_params=pltpu.CompilerParams(
            dimension_semantics=("parallel",),
            vmem_limit_bytes=vmem_limit,
        ),
        cost_estimate=cost,
    )(y, gamma2d, beta2d)


def _gln_two_pass(y, gamma2d, beta2d, eps, k_tile_stats, k_tile_norm,
                  vmem_limit, narrow):
    M, N, K = y.shape
    itemsize = y.dtype.itemsize
    inv_cnt = 1.0 / float(N * K)

    # ---------------- pass 1: per-batch statistics ---------------------------
    nk_total = pl.cdiv(K, k_tile_stats)
    # At M == 1 a single batch leaves one v7x TensorCore idle; split the K
    # reduction into 2 parallel partial accumulators (no-op on 1-TC chips).
    ksplit = 2 if (M == 1 and nk_total >= 2 and nk_total % 2 == 0) else 1
    nk_inner = nk_total // ksplit

    stats_cost = pl.CostEstimate(
        flops=3 * M * N * K,
        transcendentals=0,
        bytes_accessed=M * N * K * itemsize + 2 * ksplit * M * 4,
    )
    s1p, s2p = pl.pallas_call(
        functools.partial(_gln_stats_kernel, k_len=K, k_tile=k_tile_stats,
                          nk_inner=nk_inner, nk_total=nk_total),
        out_shape=(
            jax.ShapeDtypeStruct((ksplit, M, 1, 1), jnp.float32),
            jax.ShapeDtypeStruct((ksplit, M, 1, 1), jnp.float32),
        ),
        grid_spec=pltpu.PrefetchScalarGridSpec(
            num_scalar_prefetch=0,
            grid=(ksplit, M, nk_inner),
            in_specs=[pl.BlockSpec((1, N, k_tile_stats),
                                   lambda s, m, k: (m, 0, s * nk_inner + k))],
            out_specs=(
                pl.BlockSpec((1, 1, 1, 1), lambda s, m, k: (s, m, 0, 0)),
                pl.BlockSpec((1, 1, 1, 1), lambda s, m, k: (s, m, 0, 0)),
            ),
        ),
        compiler_params=pltpu.CompilerParams(
            dimension_semantics=("parallel", "parallel", "arbitrary"),
            vmem_limit_bytes=vmem_limit,
        ),
        cost_estimate=stats_cost,
    )(y)

    # Tiny XLA epilogue (M scalars / M*N values): fold partial sums and
    # precompute the per-(batch, channel) affine so pass 2 does no rsqrt and
    # no gamma/beta work per tile.
    s1 = jnp.sum(s1p, axis=0).reshape(M)
    s2 = jnp.sum(s2p, axis=0).reshape(M)
    mean = s1 * inv_cnt
    var = jnp.maximum(s2 * inv_cnt - mean * mean, 0.0)
    inv_std = lax.rsqrt(var + eps)
    g = gamma2d.reshape(1, N).astype(jnp.float32)
    bt = beta2d.reshape(1, N).astype(jnp.float32)
    a2 = g * inv_std[:, None]                      # (M, N)
    b2 = bt - mean[:, None] * a2                   # (M, N)
    a3 = a2.reshape(M, N, 1)
    b3 = b2.reshape(M, N, 1)

    # ---------------- pass 2: normalization (fully parallel) -----------------
    nk_norm = pl.cdiv(K, k_tile_norm)
    norm_cost = pl.CostEstimate(
        flops=2 * M * N * K,
        transcendentals=0,
        bytes_accessed=2 * M * N * K * itemsize + 2 * M * N * 4,
    )
    return pl.pallas_call(
        functools.partial(_gln_norm_kernel, narrow=narrow),
        out_shape=jax.ShapeDtypeStruct((M, N, K), y.dtype),
        grid_spec=pltpu.PrefetchScalarGridSpec(
            num_scalar_prefetch=0,
            grid=(M, nk_norm),
            in_specs=[
                pl.BlockSpec((1, N, k_tile_norm), lambda m, k: (m, 0, k)),
                pl.BlockSpec((1, N, 1), lambda m, k: (m, 0, 0)),
                pl.BlockSpec((1, N, 1), lambda m, k: (m, 0, 0)),
            ],
            out_specs=pl.BlockSpec((1, N, k_tile_norm), lambda m, k: (m, 0, k)),
        ),
        compiler_params=pltpu.CompilerParams(
            dimension_semantics=("parallel", "parallel"),
            vmem_limit_bytes=vmem_limit,
        ),
        cost_estimate=norm_cost,
    )(y, a3, b3)


def global_layer_norm(y, gamma, beta, *, eps=1e-8, force_two_pass=False,
                      stats_k_tile=None, norm_k_tile=None):
    """gLN forward. y: [M, N, K]; gamma/beta: [1, N, 1] (per-channel)."""
    M, N, K = y.shape
    g2 = jnp.reshape(gamma, (N, 1))     # lane-friendly 2-D param layout
    b2 = jnp.reshape(beta, (N, 1))
    itemsize = y.dtype.itemsize
    usable = _usable_vmem_bytes()
    narrow = _bf16_valu() and y.dtype == jnp.bfloat16

    # Single-pass footprint: double-buffered in + out slabs only (stats and
    # apply are chunked in-kernel, so f32 temporaries stay chunk-sized).
    chunk = min(K, _FUSED_CHUNK)
    single_fp = (4 * N * K * itemsize            # in + out, double-buffered
                 + 3 * N * chunk * 4             # chunk-sized f32 temporaries
                 + 2 * N * 128 * 4               # lane-padded gamma/beta
                 + (1 << 20))                    # slack for compiler scratch
    if not force_two_pass and single_fp <= usable:
        return _gln_single_pass(y, g2, b2, eps, usable, narrow)

    # Two-pass fallback: per-pass tiles sized for each pass's real footprint,
    # capped (this kernel is mem-bound; >1-2k-lane tiles buy no bandwidth).
    per_lane_stats = N * (2 * itemsize + 8)      # in double-buffer + f32 temps
    per_lane_norm = N * (4 * itemsize + 8)       # in+out double-buffer + work
    kt_stats = stats_k_tile or _pick_k_tile(K, usable // per_lane_stats,
                                            _STATS_TILE_CAP)
    kt_norm = norm_k_tile or _pick_k_tile(K, usable // per_lane_norm,
                                          _NORM_TILE_CAP)
    return _gln_two_pass(y, g2, b2, eps, kt_stats, kt_norm, usable, narrow)


# ------------------------------- reference -----------------------------------


def reference_gln(y, gamma, beta, eps=1e-8):
    """Pure-JAX mirror of the PyTorch forward."""
    mean = jnp.mean(jnp.mean(y, axis=1, keepdims=True), axis=2, keepdims=True)
    var = jnp.mean(
        jnp.mean((y - mean) ** 2, axis=1, keepdims=True), axis=2, keepdims=True
    )
    return gamma * (y - mean) / jnp.power(var + eps, 0.5) + beta


if __name__ == "__main__":
    # reset_parameters: gamma = 1, beta = 0 (also test non-trivial values).

    # 1) Single-pass fused path (inline stats/apply, K <= chunk).
    M, N, K = 2, 4, 16
    y = jax.random.normal(jax.random.PRNGKey(0), (M, N, K), dtype=jnp.float32)
    gamma = jnp.ones((1, N, 1), dtype=jnp.float32)
    beta = jnp.zeros((1, N, 1), dtype=jnp.float32)
    out = jax.block_until_ready(global_layer_norm(y, gamma, beta))
    ref = reference_gln(y, gamma, beta)
    assert out.shape == (M, N, K)
    assert jnp.allclose(out, ref, atol=1e-4, rtol=1e-4), "single-pass mismatch"

    # 2) Single-pass fused path with chunked in-kernel loops (K > chunk).
    y1 = jax.random.normal(jax.random.PRNGKey(1), (1, 4, 1280),
                           dtype=jnp.float32)
    g1 = jnp.full((1, 4, 1), 0.5, dtype=jnp.float32)
    b1 = jnp.full((1, 4, 1), 0.25, dtype=jnp.float32)
    out1 = jax.block_until_ready(global_layer_norm(y1, g1, b1))
    assert jnp.allclose(out1, reference_gln(y1, g1, b1), atol=1e-4,
                        rtol=1e-4), "chunked single-pass mismatch"

    # 3) Two-pass path at M == 1 (exercises the parallel stats K-split).
    y2 = jax.random.normal(jax.random.PRNGKey(2), (1, 8, 512),
                           dtype=jnp.float32)
    g2 = jnp.ones((1, 8, 1), dtype=jnp.float32)
    b2 = jnp.zeros((1, 8, 1), dtype=jnp.float32)
    out2 = jax.block_until_ready(global_layer_norm(
        y2, g2, b2, force_two_pass=True, stats_k_tile=128, norm_k_tile=128))
    assert jnp.allclose(out2, reference_gln(y2, g2, b2), atol=1e-4,
                        rtol=1e-4), "two-pass (K-split) mismatch"

    # 4) Two-pass path with a non-dividing tile (masked tail tile in pass 1).
    y3 = jax.random.normal(jax.random.PRNGKey(3), (2, 8, 320),
                           dtype=jnp.float32)
    g3 = jnp.full((1, 8, 1), 1.5, dtype=jnp.float32)
    b3 = jnp.full((1, 8, 1), -0.5, dtype=jnp.float32)
    out3 = jax.block_until_ready(global_layer_norm(
        y3, g3, b3, force_two_pass=True, stats_k_tile=128, norm_k_tile=128))
    assert jnp.allclose(out3, reference_gln(y3, g3, b3), atol=1e-4,
                        rtol=1e-4), "two-pass (tail mask) mismatch"

    print("KERNEL_OK")
</pallas_src>

<mosaic_0001>
module attributes {stable_mosaic.version = 11 : i64} {
  func.func @_gln_fused_kernel(%arg0: i32, %arg1: memref<1x4x16xf32, #tpu.memory_space<vmem>>, %arg2: memref<4x1xf32, #tpu.memory_space<vmem>>, %arg3: memref<4x1xf32, #tpu.memory_space<vmem>>, %arg4: memref<1x4x16xf32, #tpu.memory_space<vmem>>) attributes {dimension_semantics = [#tpu.dimension_semantics<parallel>], iteration_bounds = array<i64: 2>, scalar_prefetch = 0 : i64, scratch_operands = 0 : i64, tpu.core_type = #tpu.core_type<tc>, window_params = [{transform_indices = @transform_0, window_bounds = array<i64: 1, 4, 16>}, {pipeline_mode = #tpu.pipeline_mode<synchronous>, transform_indices = @transform_1, window_bounds = array<i64: 4, 1>}, {pipeline_mode = #tpu.pipeline_mode<synchronous>, transform_indices = @transform_2, window_bounds = array<i64: 4, 1>}, {transform_indices = @transform_3, window_bounds = array<i64: 1, 4, 16>}]} {
    %c0 = arith.constant 0 : index
    %c0_0 = arith.constant 0 : index
    %c0_1 = arith.constant 0 : index
    %0 = vector.load %arg1[%c0, %c0_0, %c0_1] : memref<1x4x16xf32, #tpu.memory_space<vmem>>, vector<1x4x16xf32>
    %1 = vector.shape_cast %0 : vector<1x4x16xf32> to vector<1x1x4x16xf32>
    %cst = arith.constant dense<0.000000e+00> : vector<1xf32>
    %2 = vector.multi_reduction <add>, %1, %cst [1, 2, 3] : vector<1x1x4x16xf32> to vector<1xf32>
    %3 = vector.shape_cast %2 : vector<1xf32> to vector<1x1x1x1xf32>
    %4 = vector.extract %3[0, 0, 0, 0] : f32 from vector<1x1x1x1xf32>
    %5 = arith.mulf %0, %0 : vector<1x4x16xf32>
    %6 = vector.shape_cast %5 : vector<1x4x16xf32> to vector<1x1x4x16xf32>
    %cst_2 = arith.constant dense<0.000000e+00> : vector<1xf32>
    %7 = vector.multi_reduction <add>, %6, %cst_2 [1, 2, 3] : vector<1x1x4x16xf32> to vector<1xf32>
    %8 = vector.shape_cast %7 : vector<1xf32> to vector<1x1x1x1xf32>
    %9 = vector.extract %8[0, 0, 0, 0] : f32 from vector<1x1x1x1xf32>
    %cst_3 = arith.constant 1.562500e-02 : f32
    %10 = arith.mulf %4, %cst_3 : f32
    %cst_4 = arith.constant 1.562500e-02 : f32
    %11 = arith.mulf %9, %cst_4 : f32
    %12 = arith.mulf %10, %10 : f32
    %13 = arith.subf %11, %12 : f32
    %cst_5 = arith.constant 0.000000e+00 : f32
    %14 = arith.maximumf %13, %cst_5 : f32
    %cst_6 = arith.constant 9.99999993E-9 : f32
    %15 = arith.addf %14, %cst_6 : f32
    %16 = math.rsqrt %15 : f32
    %c0_7 = arith.constant 0 : index
    %c0_8 = arith.constant 0 : index
    %17 = vector.load %arg2[%c0_7, %c0_8] : memref<4x1xf32, #tpu.memory_space<vmem>>, vector<4x1xf32>
    %18 = vector.broadcast %16 : f32 to vector<4x1xf32>
    %19 = arith.mulf %17, %18 : vector<4x1xf32>
    %c0_9 = arith.constant 0 : index
    %c0_10 = arith.constant 0 : index
    %20 = vector.load %arg3[%c0_9, %c0_10] : memref<4x1xf32, #tpu.memory_space<vmem>>, vector<4x1xf32>
    %21 = vector.broadcast %10 : f32 to vector<4x1xf32>
    %22 = arith.mulf %21, %19 : vector<4x1xf32>
    %23 = arith.subf %20, %22 : vector<4x1xf32>
    %24 = vector.shape_cast %19 : vector<4x1xf32> to vector<1x4x1xf32>
    %25 = vector.shape_cast %23 : vector<4x1xf32> to vector<1x4x1xf32>
    %c0_11 = arith.constant 0 : index
    %c0_12 = arith.constant 0 : index
    %c0_13 = arith.constant 0 : index
    %26 = vector.load %arg1[%c0_11, %c0_12, %c0_13] : memref<1x4x16xf32, #tpu.memory_space<vmem>>, vector<1x4x16xf32>
    %27 = vector.broadcast %24 : vector<1x4x1xf32> to vector<1x4x16xf32>
    %28 = arith.mulf %26, %27 : vector<1x4x16xf32>
    %29 = vector.broadcast %25 : vector<1x4x1xf32> to vector<1x4x16xf32>
    %30 = arith.addf %28, %29 : vector<1x4x16xf32>
    %c0_14 = arith.constant 0 : index
    %c0_15 = arith.constant 0 : index
    %c0_16 = arith.constant 0 : index
    %31 = vector.load %arg4[%c0_14, %c0_15, %c0_16] : memref<1x4x16xf32, #tpu.memory_space<vmem>>, vector<1x4x16xf32>
    tpu.vector_store %arg4[%c0_14, %c0_15, %c0_16], %30 {strides = array<i32>} : memref<1x4x16xf32, #tpu.memory_space<vmem>>, vector<1x4x16xf32>,
    return
  }
  func.func @transform_0(%arg0: i32) -> (i32, i32, i32) {
    %c0_i32 = arith.constant 0 : i32
    %c0_i32_0 = arith.constant 0 : i32
    %c0_i32_1 = arith.constant 0 : i32
    return %arg0, %c0_i32, %c0_i32_0 : i32, i32, i32
  }
  func.func @transform_1(%arg0: i32) -> (i32, i32) {
    %c0_i32 = arith.constant 0 : i32
    %c0_i32_0 = arith.constant 0 : i32
    %c0_i32_1 = arith.constant 0 : i32
    return %c0_i32, %c0_i32_0 : i32, i32
  }
  func.func @transform_2(%arg0: i32) -> (i32, i32) {
    %c0_i32 = arith.constant 0 : i32
    %c0_i32_0 = arith.constant 0 : i32
    %c0_i32_1 = arith.constant 0 : i32
    return %c0_i32, %c0_i32_0 : i32, i32
  }
  func.func @transform_3(%arg0: i32) -> (i32, i32, i32) {
    %c0_i32 = arith.constant 0 : i32
    %c0_i32_0 = arith.constant 0 : i32
    %c0_i32_1 = arith.constant 0 : i32
    return %arg0, %c0_i32, %c0_i32_0 : i32, i32, i32
  }
}

</mosaic_0001>

<llo_original>
// kernel: tpu_custom_call.1
$region0: #{tpu_custom_call.1}
  #allocation0 [shape = 'u32[]', space=smem, size = 0x4, offset = 0x4, fixed_abs, tag = 'smem constant byte address 0x4 - core index']
  #allocation1 [shape = 'u32[144,128]{1,0:T(1,128)}', space=vmem, size = 0x12000, scoped, tag = 'internal scratch']
  %s0 = inlined_call_operand.vmem [shape: f32[2,4,16], index: 0, kind: input, shape index: {}]
  %s1 = inlined_call_operand.vmem [shape: f32[4,1], index: 1, kind: input, shape index: {}]
  %s2 = inlined_call_operand.vmem [shape: f32[4,1], index: 2, kind: input, shape index: {}]
  %s3 = inlined_call_operand.hbm [shape: f32[2,4,16], index: 3, kind: output, shape index: {}]
  %s4 = sld [smem:[#allocation0]]
  $region45: #{tpu_custom_call.1} parent=0
    _
  %s6 = ssub.s32 1, %s4
  %s7 = scalar_select 0, %s6, %s4
  $region1: #{tpu_custom_call.1} parent=0
    #allocation2 [shape = 'u8[4096]{0}', space=vmem, size = 0x1000, scoped, tag = 'output window, operand 0']
    #allocation3 [shape = 's32[2]{0}', space=sflag, size = 0x8, scoped, tag = 'scoped memory for tpu_custom_call.1']
    %8 = vsyncpa [#allocation3], 0
    %s9 = scalar_lea.sflag [#allocation3], 1
    %10 = vsyncpa %s9, 0
    loop: start=0, step=1, limit=4
    $region2: #{tpu_custom_call.1} parent=1 // loop_pre_header
      _
    $region3: #{tpu_custom_call.1} parent=1 // loop_header
      %s12 = sphi 0, %s16
      %p13 = scmp.ge.s32.totalorder %s12, 4
      %s22 = sphi 0, %s24
      %s25 = sphi 0, %s22
      %s26 = sphi 0, %s25
      %s42 = sphi 0, %s26
      %s46 = sphi 0, %s46
      %s48 = sphi 0, %s46
      %s49 = sphi 0, %s48
      %s63 = sphi 0, %s49
      %s67 = sphi 0, %s67
      %s69 = sphi 0, %s67
      %s70 = sphi 0, %s69
      %s84 = sphi 0, %s70
      %s90 = sphi 0, %s92
      %s93 = sphi 0, %s90
      %s94 = sphi 0, %s93
      %s110 = sphi 0, %s94
    $region4: #{tpu_custom_call.1} parent=1 // loop_header_branch
      %15 = sbr.rel (%p13) target = $region8
    $region5: #{tpu_custom_call.1} parent=1 // loop_body
      %s17 = ssub.s32 %s12, 1
      %s18 = ssub.s32 %s12, 2
      %s19 = sadd.s32 %s12, 1
      %s20 = ssub.s32 %s12, %s19
      %p21 = scmp.eq.s32.totalorder %s20, 0
      %s23 = sadd.s32 %s22, 1
      %s24 = scalar_select %p21, %s22, %s23
      %p27 = pneg %p21
      %p28 = scmp.eq.s32.totalorder %s12, 1
      %p29 = por %p27, %p28
      %p30 = scmp.ne.s32.totalorder %s22, %s25
      %p31 = scmp.eq.s32.totalorder %s12, 0
      %p32 = por %p30, %p31
      %p33 = scmp.ne.s32.totalorder %s22, %s25
      %p34 = scmp.eq.s32.totalorder %s17, 1
      %p35 = por %p33, %p34
      %p36 = scmp.ne.s32.totalorder %s25, %s26
      %p37 = scmp.eq.s32.totalorder %s17, 0
      %p38 = por %p36, %p37
      %p39 = scmp.ne.s32.totalorder %s25, %s26
      %p40 = scmp.eq.s32.totalorder %s18, 1
      %p41 = por %p39, %p40
      %p43 = scmp.ne.s32.totalorder %s26, %s42
      %p44 = scmp.eq.s32.totalorder %s18, 0
      %p45 = por %p43, %p44
      %s47 = sadd.s32 %s46, 1
      %p50 = scmp.eq.s32.totalorder %s12, 1
      %p51 = scmp.ne.s32.totalorder %s46, %s48
      %p52 = scmp.eq.s32.totalorder %s12, 0
      %p53 = por %p51, %p52
      %p54 = scmp.ne.s32.totalorder %s46, %s48
      %p55 = scmp.eq.s32.totalorder %s17, 1
      %p56 = por %p54, %p55
      %p57 = scmp.ne.s32.totalorder %s48, %s49
      %p58 = scmp.eq.s32.totalorder %s17, 0
      %p59 = por %p57, %p58
      %p60 = scmp.ne.s32.totalorder %s48, %s49
      %p61 = scmp.eq.s32.totalorder %s18, 1
      %p62 = por %p60, %p61
      %p64 = scmp.ne.s32.totalorder %s49, %s63
      %p65 = scmp.eq.s32.totalorder %s18, 0
      %p66 = por %p64, %p65
      %s68 = sadd.s32 %s67, 1
      %p71 = scmp.eq.s32.totalorder %s12, 1
      %p72 = scmp.ne.s32.totalorder %s67, %s69
      %p73 = scmp.eq.s32.totalorder %s12, 0
      %p74 = por %p72, %p73
      %p75 = scmp.ne.s32.totalorder %s67, %s69
      %p76 = scmp.eq.s32.totalorder %s17, 1
      %p77 = por %p75, %p76
      %p78 = scmp.ne.s32.totalorder %s69, %s70
      %p79 = scmp.eq.s32.totalorder %s17, 0
      %p80 = por %p78, %p79
      %p81 = scmp.ne.s32.totalorder %s69, %s70
      %p82 = scmp.eq.s32.totalorder %s18, 1
      %p83 = por %p81, %p82
      %p85 = scmp.ne.s32.totalorder %s70, %s84
      %p86 = scmp.eq.s32.totalorder %s18, 0
      %p87 = por %p85, %p86
      %s88 = ssub.s32 %s12, %s19
      %p89 = scmp.eq.s32.totalorder %s88, 0
      %s91 = sadd.s32 %s90, 1
      %s92 = scalar_select %p89, %s90, %s91
      %p95 = pneg %p89
      %p96 = scmp.eq.s32.totalorder %s12, 1
      %p97 = por %p95, %p96
      %p98 = scmp.ne.s32.totalorder %s90, %s93
      %p99 = scmp.eq.s32.totalorder %s12, 0
      %p100 = por %p98, %p99
      %p101 = scmp.ne.s32.totalorder %s90, %s93
      %p102 = scmp.eq.s32.totalorder %s17, 1
      %p103 = por %p101, %p102
      %p104 = scmp.ne.s32.totalorder %s93, %s94
      %p105 = scmp.eq.s32.totalorder %s17, 0
      %p106 = por %p104, %p105
      %p107 = scmp.ne.s32.totalorder %s93, %s94
      %p108 = scmp.eq.s32.totalorder %s18, 1
      %p109 = por %p107, %p108
      %p111 = scmp.ne.s32.totalorder %s94, %s110
      %p112 = scmp.eq.s32.totalorder %s18, 0
      %p113 = por %p111, %p112
      %p114 = scmp.le.s32.totalorder 1, %s12
      %p115 = scmp.lt.s32.totalorder %s12, 3
      %p116 = pnand %p114, %p115
      %p117 = pneg %p116
      // Predicated region
      $region9: #{tpu_custom_call.1} parent=5 // pred_check
        _
      $region10: #{tpu_custom_call.1} parent=5 // pred_check_branch
        %119 = sbr.rel (%p116) target = $region12
      $region11: #{tpu_custom_call.1} parent=5 // pred_region
        %s120 = ssub.s32 %s12, 1
        // Predicated region
        $region13: #{tpu_custom_call.1} parent=11 // pred_check
          %p121 = pneg %p59
        $region14: #{tpu_custom_call.1} parent=11 // pred_check_branch
          %123 = sbr.rel (%p121) target = $region16
        $region15: #{tpu_custom_call.1} parent=11 // pred_region
          _
        $region16: #{tpu_custom_call.1} parent=11 // pred_fallthru
          _
        // Predicated region
        $region17: #{tpu_custom_call.1} parent=11 // pred_check
          %p124 = pneg %p80
        $region18: #{tpu_custom_call.1} parent=11 // pred_check_branch
          %126 = sbr.rel (%p124) target = $region20
        $region19: #{tpu_custom_call.1} parent=11 // pred_region
          _
        $region20: #{tpu_custom_call.1} parent=11 // pred_fallthru
          _
      $region12: #{tpu_custom_call.1} parent=5 // pred_fallthru
        _
      %p127 = scmp.lt.s32.totalorder %s12, 2
      // Predicated region
      $region21: #{tpu_custom_call.1} parent=5 // pred_check
        %p128 = pneg %p127
      $region22: #{tpu_custom_call.1} parent=5 // pred_check_branch
        %130 = sbr.rel (%p128) target = $region24
      $region23: #{tpu_custom_call.1} parent=5 // pred_region
        // Predicated region
        $region25: #{tpu_custom_call.1} parent=23 // pred_check
          %p131 = pneg %p32
        $region26: #{tpu_custom_call.1} parent=23 // pred_check_branch
          %133 = sbr.rel (%p131) target = $region28
        $region27: #{tpu_custom_call.1} parent=23 // pred_region
          %p134 = scmp.lt.s32.totalorder %s12, 1
          %s135 = scalar_select %p134, %s12, 1
          %s136 = smul.addr %s135, 4
          %s137 = scalar_lea.vmem %s0, %s136
        $region28: #{tpu_custom_call.1} parent=23 // pred_fallthru
          _
      $region24: #{tpu_custom_call.1} parent=5 // pred_fallthru
        _
      %p138 = scmp.le.s32.totalorder 1, %s12
      %p139 = scmp.lt.s32.totalorder %s12, 3
      %p140 = pnand %p138, %p139
      %p141 = pneg %p140
      // Predicated region
      $region29: #{tpu_custom_call.1} parent=5 // pred_check
        _
      $region30: #{tpu_custom_call.1} parent=5 // pred_check_branch
        %143 = sbr.rel (%p140) target = $region32
      $region31: #{tpu_custom_call.1} parent=5 // pred_region
        %s144 = ssub.s32 %s12, 1
        %p145 = scmp.lt.s32.totalorder %s17, 1
        %s146 = scalar_select %p145, %s17, 1
        %s147 = smul.addr %s146, 4
        %s148 = scalar_lea.vmem %s0, %s147
        %p149 = pneg %p38
        %p150 = pneg %p35
        %p151 = pneg %p59
        %p152 = pneg %p56
        %p153 = pneg %p80
        %p154 = pneg %p77
        %p155 = pneg %p106
        %p156 = pneg %p103
        %s157 = sand.u32 %s93, 1
        %s158 = scalar_lea.sflag [#allocation3], %s157
        %s159 = sand.u32 %s93, 1
        %s160 = smul.addr %s159, 4
        %s161 = scalar_lea.vmem [#allocation2], %s160
        %p162 = scmp.lt.s32.totalorder %s17, 1
        %s163 = scalar_select %p162, %s17, 1
        %s164 = smul.addr %s163, 4
        %s165 = scalar_lea.vmem %s0, %s164
        %v166 = vld [vmem:[%s165] sm:$0xf]
        %vm167 = vcmask 125952
        %v168 = vsel %vm167, %v166, 0.0
        %169 = vadd.xlane.f32.xlu0 %v168
        %v170 = vpop.xlane.xlu0 %169
        %v171 = vrot.slane %v170, 4
        %v172 = vadd.f32 %v170, %v171
        %v173 = vrot.slane %v172, 2
        %v174 = vadd.f32 %v172, %v173
        %v175 = vrot.slane %v174, 1
        %v176 = vadd.f32 %v174, %v175
        %s177 = vtos %v176
        %v178 = vmul.f32 %v166, %v166
        %v179 = vsel %vm167, %v178, 0.0
        %180 = vadd.xlane.f32.xlu0 %v179
        %v181 = vpop.xlane.xlu0 %180
        %v182 = vrot.slane %v181, 4
        %v183 = vadd.f32 %v181, %v182
        %v184 = vrot.slane %v183, 2
        %v185 = vadd.f32 %v183, %v184
        %v186 = vrot.slane %v185, 1
        %v187 = vadd.f32 %v185, %v186
        %s188 = vtos %v187
        %s189 = smul.f32 %s177, 0.015625
        %s190 = smul.f32 %s188, 0.015625
        %s191 = smul.f32 %s189, %s189
        %s192 = ssub.f32 %s190, %s191
        %s193 = smax.f32 %s192, 0.0
        %s194 = sadd.f32 %s193, 1e-08
        %v195 = vstv %s194
        %v196 = vrsqrt.pop %v195
        %s197 = vtos %v196
        %v198 = vld [vmem:[%s1] sm:$0xf]
        %v199 = vstv %s197
        %v200 = vmul.f32 %v198, %v199
        %v201 = vld [vmem:[%s2] sm:$0xf]
        %v202 = vstv %s189
        %v203 = vmul.f32 %v202, %v200
        %v204 = vsub.f32 %v201, %v203
        %206 = vset.pattern.permute.xlu0 0
        %207 = vperm.xlu0 %206, %v200
        %v208 = vpop.permute.xlu0 %207
        %v210 = vmul.f32 %v166, %v208
        %212 = vset.pattern.permute.xlu0 0
        %213 = vperm.xlu0 %212, %v204
        %v214 = vpop.permute.xlu0 %213
        %v216 = vadd.f32 %v210, %v214
        %217 = vst.msk [vmem:[%s161] sm:$0xf] %vm167, %v216
        %s218 = sand.u32 %s93, 1
        %s219 = scalar_lea.sflag [#allocation3], %s218
        %s220 = sand.u32 %s93, 1
        %s221 = smul.addr %s220, 4
        %s222 = scalar_lea.vmem [#allocation2], %s221
        // Predicated region
        $region33: #{tpu_custom_call.1} parent=31 // pred_check
          %p223 = pneg %p103
        $region34: #{tpu_custom_call.1} parent=31 // pred_check_branch
          %225 = sbr.rel (%p223) target = $region36
        $region35: #{tpu_custom_call.1} parent=31 // pred_region
          %s227 = ssub.s32 64, 64
          %228 = vsyncadd %s219, %s227
          %s229 = smul.addr %s17, 64
          %s230 = scalar_lea.hbm %s3, %s229
          %s232 = sshll.u32 %s222, 4
          %s233 = int_to_ptr.vmem [resolvable:$true] %s232
          %235 = dma.vmem_to_hbm [thread:$0]  %s233, 64, %s230, %s219
        $region36: #{tpu_custom_call.1} parent=31 // pred_fallthru
          _
      $region32: #{tpu_custom_call.1} parent=5 // pred_fallthru
        _
      %p236 = scmp.le.s32.totalorder 2, %s12
      // Predicated region
      $region37: #{tpu_custom_call.1} parent=5 // pred_check
        %p237 = pneg %p236
      $region38: #{tpu_custom_call.1} parent=5 // pred_check_branch
        %239 = sbr.rel (%p237) target = $region40
      $region39: #{tpu_custom_call.1} parent=5 // pred_region
        %s240 = ssub.s32 %s12, 2
        // Predicated region
        $region41: #{tpu_custom_call.1} parent=39 // pred_check
          %p241 = pneg %p109
        $region42: #{tpu_custom_call.1} parent=39 // pred_check_branch
          %243 = sbr.rel (%p241) target = $region44
        $region43: #{tpu_custom_call.1} parent=39 // pred_region
          %s244 = sand.u32 %s94, 1
          %s245 = scalar_lea.sflag [#allocation3], %s244
          %s246 = sand.u32 %s94, 1
          %s247 = smul.addr %s246, 4
          %s248 = scalar_lea.vmem [#allocation2], %s247
          %249 = dma.done %s245, 64
        $region44: #{tpu_custom_call.1} parent=39 // pred_fallthru
          _
      $region40: #{tpu_custom_call.1} parent=5 // pred_fallthru
        _
    $region6: #{tpu_custom_call.1} parent=1 // loop_footer
      %s16 = sadd.s32 1, %s12
    $region7: #{tpu_custom_call.1} parent=1 // loop_footer_branch
      %11 = sbr.rel target = $region3
    $region8: #{tpu_custom_call.1} parent=1 // loop_exit
      _
    %250 = vsyncpa [#allocation3], 1
    %s251 = scalar_lea.sflag [#allocation3], 1
    %252 = vsyncpa %s251, 1

</llo_original>
